<compile_context>
chip_gen: v6e
topology: v6e:2x2x1
jax: 0.10.0
libtpu: 0.0.40
codegen_flags: <defaults>
</compile_context>

<pallas_src>
import jax
import jax.numpy as jnp
from jax.experimental import pallas as pl
from jax.experimental.pallas import tpu as pltpu


def _leaky_relu(h, slope=0.2):
    return jnp.where(h >= 0, h, slope * h)


def _round_up(x, m):
    return ((x + m - 1) // m) * m


def mlp_kernel(x_ref, w1_ref, b1_ref, w2_ref, b2_ref, w3_ref, b3_ref, o_ref):
    # MXU matmuls in bf16 with f32 accumulation; epilogue (bias + leaky_relu)
    # stays f32 on the VPU.
    h = jnp.dot(x_ref[...], w1_ref[...], preferred_element_type=jnp.float32)
    h = _leaky_relu(h + b1_ref[...])
    h = jnp.dot(h.astype(w2_ref.dtype), w2_ref[...],
                preferred_element_type=jnp.float32)
    h = _leaky_relu(h + b2_ref[...])
    h = jnp.dot(h.astype(w3_ref.dtype), w3_ref[...],
                preferred_element_type=jnp.float32)
    h = _leaky_relu(h + b3_ref[...])
    o_ref[...] = h.astype(o_ref.dtype)


def classifier_forward(x, params, *, tb=None):
    """x: (B, input_dim) float32. Returns (B, n_classes) float32."""
    w1, b1, w2, b2, w3, b3 = params
    B, D = x.shape
    H = w1.shape[1]
    C = w3.shape[1]

    # Lane-dense output width: pad n_classes up to a multiple of 128 so the
    # final matmul N-dim and the output stores are full 128-lane (no vst.msk).
    Cp = _round_up(max(C, 1), 128)

    if tb is None:
        # Large batch tile for MXU utilization, but keep >=2 grid steps when
        # the batch permits so both v7x TensorCores get work.
        tb = min(512, max(8, _round_up(pl.cdiv(B, 2), 8)))
        # Conservative VMEM budget (safe for v7x's 64 MiB / default scoped
        # limit): double-buffered bf16 x tile + double-buffered f32 output
        # tile + (double-buffered) weights/biases.
        budget = 24 * 1024 * 1024
        weight_bytes = 2 * (2 * (D * H + H * H + H * Cp) + 4 * (2 * H + Cp))
        per_row = 2 * (2 * D) + 2 * (4 * Cp)
        tb_cap = max(8, ((budget - weight_bytes) // per_row) // 8 * 8)
        tb = min(tb, tb_cap)
    assert tb % 8 == 0, "batch tile must be a multiple of 8"

    # Ragged batch: pad up to a whole number of tiles instead of forcing a
    # divisor tb.
    Bp = _round_up(B, tb)

    # bf16 matmul operands (MXU-native on v5e/v6e/v7x); biases stay f32.
    xb = x.astype(jnp.bfloat16)
    if Bp != B:
        xb = jnp.pad(xb, ((0, Bp - B), (0, 0)))
    w1b = w1.astype(jnp.bfloat16)
    w2b = w2.astype(jnp.bfloat16)
    w3b = jnp.pad(w3, ((0, 0), (0, Cp - C))).astype(jnp.bfloat16)
    b3p = jnp.pad(b3, ((0, 0), (0, Cp - C)))

    grid = (Bp // tb,)
    out = pl.pallas_call(
        mlp_kernel,
        out_shape=jax.ShapeDtypeStruct((Bp, Cp), jnp.float32),
        grid_spec=pltpu.PrefetchScalarGridSpec(
            num_scalar_prefetch=0,
            grid=grid,
            in_specs=[
                pl.BlockSpec((tb, D), lambda i: (i, 0)),   # x batch tile (bf16)
                # Weights/biases have a constant index_map; the pipeline does
                # not re-DMA them between grid steps.
                # TODO(synk): could single-buffer these via
                # pipeline_mode=pl.Buffered(1) to save ~0.5 MiB VMEM.
                pl.BlockSpec((D, H), lambda i: (0, 0)),    # W1 (bf16, full)
                pl.BlockSpec((1, H), lambda i: (0, 0)),    # b1 (f32)
                pl.BlockSpec((H, H), lambda i: (0, 0)),    # W2 (bf16, full)
                pl.BlockSpec((1, H), lambda i: (0, 0)),    # b2 (f32)
                pl.BlockSpec((H, Cp), lambda i: (0, 0)),   # W3 (bf16, 128-padded)
                pl.BlockSpec((1, Cp), lambda i: (0, 0)),   # b3 (f32, 128-padded)
            ],
            out_specs=pl.BlockSpec((tb, Cp), lambda i: (i, 0)),
        ),
        compiler_params=pltpu.CompilerParams(
            dimension_semantics=("parallel",),
        ),
    )(xb, w1b, b1, w2b, b2, w3b, b3p)

    return out[:B, :C]


def init_params(key, input_dim, n_classes, hidden=256, dtype=jnp.float32):
    """Deterministic synthetic init (uniform, PyTorch-default fan-in scaling)."""
    ks = jax.random.split(key, 6)

    def lin(kw, kb, fan_in, fan_out):
        bound = 1.0 / jnp.sqrt(fan_in)
        w = jax.random.uniform(kw, (fan_in, fan_out), dtype, -bound, bound)
        b = jax.random.uniform(kb, (1, fan_out), dtype, -bound, bound)
        return w, b

    w1, b1 = lin(ks[0], ks[1], input_dim, hidden)
    w2, b2 = lin(ks[2], ks[3], hidden, hidden)
    w3, b3 = lin(ks[4], ks[5], hidden, n_classes)
    return (w1, b1, w2, b2, w3, b3)


def reference_forward(x, params):
    """Pure-JAX f32 reference matching the PyTorch forward."""
    w1, b1, w2, b2, w3, b3 = params
    h = _leaky_relu(x @ w1 + b1)
    h = _leaky_relu(h @ w2 + b2)
    h = _leaky_relu(h @ w3 + b3)
    return h


if __name__ == "__main__":
    key = jax.random.PRNGKey(0)
    batch, input_dim, n_classes = 16, 32, 10

    kx, kp = jax.random.split(key)
    x = jax.random.normal(kx, (batch, input_dim), jnp.float32)
    params = init_params(kp, input_dim, n_classes)

    out = classifier_forward(x, params)
    out = jax.block_until_ready(out)

    ref = reference_forward(x, params)
    assert out.shape == (batch, n_classes)
    # bf16 matmul operands vs f32 reference -> loosened tolerance.
    assert jnp.allclose(out, ref, atol=5e-2, rtol=5e-2), "mismatch vs reference"

    print("KERNEL_OK")
</pallas_src>

<mosaic_0001>
module attributes {stable_mosaic.version = 11 : i64} {
  func.func @mlp_kernel(%arg0: i32, %arg1: memref<8x32xbf16, #tpu.memory_space<vmem>>, %arg2: memref<32x256xbf16, #tpu.memory_space<vmem>>, %arg3: memref<1x256xf32, #tpu.memory_space<vmem>>, %arg4: memref<256x256xbf16, #tpu.memory_space<vmem>>, %arg5: memref<1x256xf32, #tpu.memory_space<vmem>>, %arg6: memref<256x128xbf16, #tpu.memory_space<vmem>>, %arg7: memref<1x128xf32, #tpu.memory_space<vmem>>, %arg8: memref<8x128xf32, #tpu.memory_space<vmem>>) attributes {dimension_semantics = [#tpu.dimension_semantics<parallel>], iteration_bounds = array<i64: 2>, scalar_prefetch = 0 : i64, scratch_operands = 0 : i64, tpu.core_type = #tpu.core_type<tc>, window_params = [{transform_indices = @transform_0, window_bounds = array<i64: 8, 32>}, {pipeline_mode = #tpu.pipeline_mode<synchronous>, transform_indices = @transform_1, window_bounds = array<i64: 32, 256>}, {pipeline_mode = #tpu.pipeline_mode<synchronous>, transform_indices = @transform_2, window_bounds = array<i64: 1, 256>}, {pipeline_mode = #tpu.pipeline_mode<synchronous>, transform_indices = @transform_3, window_bounds = array<i64: 256, 256>}, {pipeline_mode = #tpu.pipeline_mode<synchronous>, transform_indices = @transform_4, window_bounds = array<i64: 1, 256>}, {pipeline_mode = #tpu.pipeline_mode<synchronous>, transform_indices = @transform_5, window_bounds = array<i64: 256, 128>}, {pipeline_mode = #tpu.pipeline_mode<synchronous>, transform_indices = @transform_6, window_bounds = array<i64: 1, 128>}, {transform_indices = @transform_7, window_bounds = array<i64: 8, 128>}]} {
    %c0 = arith.constant 0 : index
    %c0_0 = arith.constant 0 : index
    %0 = vector.load %arg1[%c0, %c0_0] : memref<8x32xbf16, #tpu.memory_space<vmem>>, vector<8x32xbf16>
    %c0_1 = arith.constant 0 : index
    %c0_2 = arith.constant 0 : index
    %1 = vector.load %arg2[%c0_1, %c0_2] : memref<32x256xbf16, #tpu.memory_space<vmem>>, vector<32x256xbf16>
    %cst = arith.constant dense<0.000000e+00> : vector<8x256xf32>
    %2 = tpu.matmul %0, %1, %cst {dimension_numbers = #tpu.dot_dimension_numbers<[1], [0], [0], [1], [0, 0, 1, 1], [], []>} : vector<8x32xbf16>, vector<32x256xbf16>, vector<8x256xf32> -> vector<8x256xf32>
    %c0_3 = arith.constant 0 : index
    %c0_4 = arith.constant 0 : index
    %3 = vector.load %arg3[%c0_3, %c0_4] : memref<1x256xf32, #tpu.memory_space<vmem>>, vector<1x256xf32>
    %4 = vector.broadcast %3 : vector<1x256xf32> to vector<8x256xf32>
    %5 = arith.addf %2, %4 : vector<8x256xf32>
    %cst_5 = arith.constant 0.000000e+00 : f32
    %6 = vector.broadcast %cst_5 : f32 to vector<8x256xf32>
    %7 = arith.cmpf oge, %5, %6 : vector<8x256xf32>
    %cst_6 = arith.constant 2.000000e-01 : f32
    %8 = vector.broadcast %cst_6 : f32 to vector<8x256xf32>
    %9 = arith.mulf %8, %5 : vector<8x256xf32>
    %10 = arith.select %7, %5, %9 : vector<8x256xi1>, vector<8x256xf32>
    %11 = arith.truncf %10 : vector<8x256xf32> to vector<8x256xbf16>
    %c0_7 = arith.constant 0 : index
    %c0_8 = arith.constant 0 : index
    %12 = vector.load %arg4[%c0_7, %c0_8] : memref<256x256xbf16, #tpu.memory_space<vmem>>, vector<256x256xbf16>
    %cst_9 = arith.constant dense<0.000000e+00> : vector<8x256xf32>
    %13 = tpu.matmul %11, %12, %cst_9 {dimension_numbers = #tpu.dot_dimension_numbers<[1], [0], [0], [1], [0, 0, 1, 1], [], []>} : vector<8x256xbf16>, vector<256x256xbf16>, vector<8x256xf32> -> vector<8x256xf32>
    %c0_10 = arith.constant 0 : index
    %c0_11 = arith.constant 0 : index
    %14 = vector.load %arg5[%c0_10, %c0_11] : memref<1x256xf32, #tpu.memory_space<vmem>>, vector<1x256xf32>
    %15 = vector.broadcast %14 : vector<1x256xf32> to vector<8x256xf32>
    %16 = arith.addf %13, %15 : vector<8x256xf32>
    %cst_12 = arith.constant 0.000000e+00 : f32
    %17 = vector.broadcast %cst_12 : f32 to vector<8x256xf32>
    %18 = arith.cmpf oge, %16, %17 : vector<8x256xf32>
    %cst_13 = arith.constant 2.000000e-01 : f32
    %19 = vector.broadcast %cst_13 : f32 to vector<8x256xf32>
    %20 = arith.mulf %19, %16 : vector<8x256xf32>
    %21 = arith.select %18, %16, %20 : vector<8x256xi1>, vector<8x256xf32>
    %22 = arith.truncf %21 : vector<8x256xf32> to vector<8x256xbf16>
    %c0_14 = arith.constant 0 : index
    %c0_15 = arith.constant 0 : index
    %23 = vector.load %arg6[%c0_14, %c0_15] : memref<256x128xbf16, #tpu.memory_space<vmem>>, vector<256x128xbf16>
    %cst_16 = arith.constant dense<0.000000e+00> : vector<8x128xf32>
    %24 = tpu.matmul %22, %23, %cst_16 {dimension_numbers = #tpu.dot_dimension_numbers<[1], [0], [0], [1], [0, 0, 1, 1], [], []>} : vector<8x256xbf16>, vector<256x128xbf16>, vector<8x128xf32> -> vector<8x128xf32>
    %c0_17 = arith.constant 0 : index
    %c0_18 = arith.constant 0 : index
    %25 = vector.load %arg7[%c0_17, %c0_18] : memref<1x128xf32, #tpu.memory_space<vmem>>, vector<1x128xf32>
    %26 = vector.broadcast %25 : vector<1x128xf32> to vector<8x128xf32>
    %27 = arith.addf %24, %26 : vector<8x128xf32>
    %cst_19 = arith.constant 0.000000e+00 : f32
    %28 = vector.broadcast %cst_19 : f32 to vector<8x128xf32>
    %29 = arith.cmpf oge, %27, %28 : vector<8x128xf32>
    %cst_20 = arith.constant 2.000000e-01 : f32
    %30 = vector.broadcast %cst_20 : f32 to vector<8x128xf32>
    %31 = arith.mulf %30, %27 : vector<8x128xf32>
    %32 = arith.select %29, %27, %31 : vector<8x128xi1>, vector<8x128xf32>
    %c0_21 = arith.constant 0 : index
    %c0_22 = arith.constant 0 : index
    %33 = vector.load %arg8[%c0_21, %c0_22] : memref<8x128xf32, #tpu.memory_space<vmem>>, vector<8x128xf32>
    tpu.vector_store %arg8[%c0_21, %c0_22], %32 {strides = array<i32>} : memref<8x128xf32, #tpu.memory_space<vmem>>, vector<8x128xf32>,
    return
  }
  func.func @transform_0(%arg0: i32) -> (i32, i32) {
    %c0_i32 = arith.constant 0 : i32
    %c0_i32_0 = arith.constant 0 : i32
    return %arg0, %c0_i32 : i32, i32
  }
  func.func @transform_1(%arg0: i32) -> (i32, i32) {
    %c0_i32 = arith.constant 0 : i32
    %c0_i32_0 = arith.constant 0 : i32
    %c0_i32_1 = arith.constant 0 : i32
    return %c0_i32, %c0_i32_0 : i32, i32
  }
  func.func @transform_2(%arg0: i32) -> (i32, i32) {
    %c0_i32 = arith.constant 0 : i32
    %c0_i32_0 = arith.constant 0 : i32
    %c0_i32_1 = arith.constant 0 : i32
    return %c0_i32, %c0_i32_0 : i32, i32
  }
  func.func @transform_3(%arg0: i32) -> (i32, i32) {
    %c0_i32 = arith.constant 0 : i32
    %c0_i32_0 = arith.constant 0 : i32
    %c0_i32_1 = arith.constant 0 : i32
    return %c0_i32, %c0_i32_0 : i32, i32
  }
  func.func @transform_4(%arg0: i32) -> (i32, i32) {
    %c0_i32 = arith.constant 0 : i32
    %c0_i32_0 = arith.constant 0 : i32
    %c0_i32_1 = arith.constant 0 : i32
    return %c0_i32, %c0_i32_0 : i32, i32
  }
  func.func @transform_5(%arg0: i32) -> (i32, i32) {
    %c0_i32 = arith.constant 0 : i32
    %c0_i32_0 = arith.constant 0 : i32
    %c0_i32_1 = arith.constant 0 : i32
    return %c0_i32, %c0_i32_0 : i32, i32
  }
  func.func @transform_6(%arg0: i32) -> (i32, i32) {
    %c0_i32 = arith.constant 0 : i32
    %c0_i32_0 = arith.constant 0 : i32
    %c0_i32_1 = arith.constant 0 : i32
    return %c0_i32, %c0_i32_0 : i32, i32
  }
  func.func @transform_7(%arg0: i32) -> (i32, i32) {
    %c0_i32 = arith.constant 0 : i32
    %c0_i32_0 = arith.constant 0 : i32
    return %arg0, %c0_i32 : i32, i32
  }
}

</mosaic_0001>

<llo_original>
// kernel: tpu_custom_call.1
$region0: #{tpu_custom_call.1}
  #allocation0 [shape = 'u32[]', space=smem, size = 0x4, offset = 0x4, fixed_abs, tag = 'smem constant byte address 0x4 - core index']
  #allocation1 [shape = 'u32[144,128]{1,0:T(1,128)}', space=vmem, size = 0x12000, scoped, tag = 'internal scratch']
  %s0 = inlined_call_operand.hbm [shape: bf16[16,32], index: 0, kind: input, shape index: {}]
  %s1 = inlined_call_operand.hbm [shape: bf16[32,256], index: 1, kind: input, shape index: {}]
  %s2 = inlined_call_operand.vmem [shape: f32[1,256], index: 2, kind: input, shape index: {}]
  %s3 = inlined_call_operand.hbm [shape: bf16[256,256], index: 3, kind: input, shape index: {}]
  %s4 = inlined_call_operand.vmem [shape: f32[1,256], index: 4, kind: input, shape index: {}]
  %s5 = inlined_call_operand.hbm [shape: bf16[256,128], index: 5, kind: input, shape index: {}]
  %s6 = inlined_call_operand.vmem [shape: f32[1,128], index: 6, kind: input, shape index: {}]
  %s7 = inlined_call_operand.hbm [shape: f32[16,128], index: 7, kind: output, shape index: {}]
  %s8 = sld [smem:[#allocation0]]
  $region77: #{tpu_custom_call.1} parent=0
    _
  %s10 = ssub.s32 1, %s8
  %s11 = scalar_select 0, %s10, %s8
  $region1: #{tpu_custom_call.1} parent=0
    #allocation2 [shape = 'u8[4096]{0}', space=vmem, size = 0x1000, scoped, tag = 'input window, operand 0']
    #allocation3 [shape = 's32[2]{0}', space=sflag, size = 0x8, scoped, tag = 'scoped memory for tpu_custom_call.1']
    #allocation4 [shape = 's32[2]{0}', space=sflag, size = 0x8, scoped, tag = 'scoped memory for tpu_custom_call.1']
    #allocation5 [shape = 'u8[16384]{0}', space=vmem, size = 0x4000, scoped, tag = 'input window, operand 1, single buffered']
    #allocation6 [shape = 's32[1]{0}', space=sflag, size = 0x4, scoped, tag = 'scoped memory for tpu_custom_call.1']
    #allocation7 [shape = 'u8[131072]{0}', space=vmem, size = 0x20000, scoped, tag = 'input window, operand 3, single buffered']
    #allocation8 [shape = 'u8[65536]{0}', space=vmem, size = 0x10000, scoped, tag = 'input window, operand 5, single buffered']
    #allocation9 [shape = 's32[1]{0}', space=sflag, size = 0x4, scoped, tag = 'scoped memory for tpu_custom_call.1']
    #allocation10 [shape = 'u8[8192]{0}', space=vmem, size = 0x2000, scoped, tag = 'output window, operand 0']
    %12 = vsyncpa [#allocation3], 0
    %s13 = scalar_lea.sflag [#allocation3], 1
    %14 = vsyncpa %s13, 0
    %15 = vsyncpa [#allocation6], 0
    %16 = vsyncpa [#allocation9], 0
    %17 = vsyncpa [#allocation4], 0
    %s18 = scalar_lea.sflag [#allocation4], 1
    %19 = vsyncpa %s18, 0
    loop: start=0, step=1, limit=4
    $region2: #{tpu_custom_call.1} parent=1 // loop_pre_header
      _
    $region3: #{tpu_custom_call.1} parent=1 // loop_header
      %s21 = sphi 0, %s25
      %p22 = scmp.ge.s32.totalorder %s21, 4
      %s31 = sphi 0, %s33
      %s34 = sphi 0, %s31
      %s35 = sphi 0, %s34
      %s51 = sphi 0, %s35
      %s55 = sphi 0, %s55
      %s57 = sphi 0, %s55
      %s58 = sphi 0, %s57
      %s72 = sphi 0, %s58
      %s76 = sphi 0, %s76
      %s78 = sphi 0, %s76
      %s79 = sphi 0, %s78
      %s93 = sphi 0, %s79
      %s97 = sphi 0, %s97
      %s99 = sphi 0, %s97
      %s100 = sphi 0, %s99
      %s114 = sphi 0, %s100
      %s118 = sphi 0, %s118
      %s120 = sphi 0, %s118
      %s121 = sphi 0, %s120
      %s135 = sphi 0, %s121
      %s139 = sphi 0, %s139
      %s141 = sphi 0, %s139
      %s142 = sphi 0, %s141
      %s156 = sphi 0, %s142
      %s160 = sphi 0, %s160
      %s162 = sphi 0, %s160
      %s163 = sphi 0, %s162
      %s177 = sphi 0, %s163
      %s183 = sphi 0, %s185
      %s186 = sphi 0, %s183
      %s187 = sphi 0, %s186
      %s203 = sphi 0, %s187
    $region4: #{tpu_custom_call.1} parent=1 // loop_header_branch
      %24 = sbr.rel (%p22) target = $region8
    $region5: #{tpu_custom_call.1} parent=1 // loop_body
      %s26 = ssub.s32 %s21, 1
      %s27 = ssub.s32 %s21, 2
      %s28 = sadd.s32 %s21, 1
      %s29 = ssub.s32 %s21, %s28
      %p30 = scmp.eq.s32.totalorder %s29, 0
      %s32 = sadd.s32 %s31, 1
      %s33 = scalar_select %p30, %s31, %s32
      %p36 = pneg %p30
      %p37 = scmp.eq.s32.totalorder %s21, 1
      %p38 = por %p36, %p37
      %p39 = scmp.ne.s32.totalorder %s31, %s34
      %p40 = scmp.eq.s32.totalorder %s21, 0
      %p41 = por %p39, %p40
      %p42 = scmp.ne.s32.totalorder %s31, %s34
      %p43 = scmp.eq.s32.totalorder %s26, 1
      %p44 = por %p42, %p43
      %p45 = scmp.ne.s32.totalorder %s34, %s35
      %p46 = scmp.eq.s32.totalorder %s26, 0
      %p47 = por %p45, %p46
      %p48 = scmp.ne.s32.totalorder %s34, %s35
      %p49 = scmp.eq.s32.totalorder %s27, 1
      %p50 = por %p48, %p49
      %p52 = scmp.ne.s32.totalorder %s35, %s51
      %p53 = scmp.eq.s32.totalorder %s27, 0
      %p54 = por %p52, %p53
      %s56 = sadd.s32 %s55, 1
      %p59 = scmp.eq.s32.totalorder %s21, 1
      %p60 = scmp.ne.s32.totalorder %s55, %s57
      %p61 = scmp.eq.s32.totalorder %s21, 0
      %p62 = por %p60, %p61
      %p63 = scmp.ne.s32.totalorder %s55, %s57
      %p64 = scmp.eq.s32.totalorder %s26, 1
      %p65 = por %p63, %p64
      %p66 = scmp.ne.s32.totalorder %s57, %s58
      %p67 = scmp.eq.s32.totalorder %s26, 0
      %p68 = por %p66, %p67
      %p69 = scmp.ne.s32.totalorder %s57, %s58
      %p70 = scmp.eq.s32.totalorder %s27, 1
      %p71 = por %p69, %p70
      %p73 = scmp.ne.s32.totalorder %s58, %s72
      %p74 = scmp.eq.s32.totalorder %s27, 0
      %p75 = por %p73, %p74
      %s77 = sadd.s32 %s76, 1
      %p80 = scmp.eq.s32.totalorder %s21, 1
      %p81 = scmp.ne.s32.totalorder %s76, %s78
      %p82 = scmp.eq.s32.totalorder %s21, 0
      %p83 = por %p81, %p82
      %p84 = scmp.ne.s32.totalorder %s76, %s78
      %p85 = scmp.eq.s32.totalorder %s26, 1
      %p86 = por %p84, %p85
      %p87 = scmp.ne.s32.totalorder %s78, %s79
      %p88 = scmp.eq.s32.totalorder %s26, 0
      %p89 = por %p87, %p88
      %p90 = scmp.ne.s32.totalorder %s78, %s79
      %p91 = scmp.eq.s32.totalorder %s27, 1
      %p92 = por %p90, %p91
      %p94 = scmp.ne.s32.totalorder %s79, %s93
      %p95 = scmp.eq.s32.totalorder %s27, 0
      %p96 = por %p94, %p95
      %s98 = sadd.s32 %s97, 1
      %p101 = scmp.eq.s32.totalorder %s21, 1
      %p102 = scmp.ne.s32.totalorder %s97, %s99
      %p103 = scmp.eq.s32.totalorder %s21, 0
      %p104 = por %p102, %p103
      %p105 = scmp.ne.s32.totalorder %s97, %s99
      %p106 = scmp.eq.s32.totalorder %s26, 1
      %p107 = por %p105, %p106
      %p108 = scmp.ne.s32.totalorder %s99, %s100
      %p109 = scmp.eq.s32.totalorder %s26, 0
      %p110 = por %p108, %p109
      %p111 = scmp.ne.s32.totalorder %s99, %s100
      %p112 = scmp.eq.s32.totalorder %s27, 1
      %p113 = por %p111, %p112
      %p115 = scmp.ne.s32.totalorder %s100, %s114
      %p116 = scmp.eq.s32.totalorder %s27, 0
      %p117 = por %p115, %p116
      %s119 = sadd.s32 %s118, 1
      %p122 = scmp.eq.s32.totalorder %s21, 1
      %p123 = scmp.ne.s32.totalorder %s118, %s120
      %p124 = scmp.eq.s32.totalorder %s21, 0
      %p125 = por %p123, %p124
      %p126 = scmp.ne.s32.totalorder %s118, %s120
      %p127 = scmp.eq.s32.totalorder %s26, 1
      %p128 = por %p126, %p127
      %p129 = scmp.ne.s32.totalorder %s120, %s121
      %p130 = scmp.eq.s32.totalorder %s26, 0
      %p131 = por %p129, %p130
      %p132 = scmp.ne.s32.totalorder %s120, %s121
      %p133 = scmp.eq.s32.totalorder %s27, 1
      %p134 = por %p132, %p133
      %p136 = scmp.ne.s32.totalorder %s121, %s135
      %p137 = scmp.eq.s32.totalorder %s27, 0
      %p138 = por %p136, %p137
      %s140 = sadd.s32 %s139, 1
      %p143 = scmp.eq.s32.totalorder %s21, 1
      %p144 = scmp.ne.s32.totalorder %s139, %s141
      %p145 = scmp.eq.s32.totalorder %s21, 0
      %p146 = por %p144, %p145
      %p147 = scmp.ne.s32.totalorder %s139, %s141
      %p148 = scmp.eq.s32.totalorder %s26, 1
      %p149 = por %p147, %p148
      %p150 = scmp.ne.s32.totalorder %s141, %s142
      %p151 = scmp.eq.s32.totalorder %s26, 0
      %p152 = por %p150, %p151
      %p153 = scmp.ne.s32.totalorder %s141, %s142
      %p154 = scmp.eq.s32.totalorder %s27, 1
      %p155 = por %p153, %p154
      %p157 = scmp.ne.s32.totalorder %s142, %s156
      %p158 = scmp.eq.s32.totalorder %s27, 0
      %p159 = por %p157, %p158
      %s161 = sadd.s32 %s160, 1
      %p164 = scmp.eq.s32.totalorder %s21, 1
      %p165 = scmp.ne.s32.totalorder %s160, %s162
      %p166 = scmp.eq.s32.totalorder %s21, 0
      %p167 = por %p165, %p166
      %p168 = scmp.ne.s32.totalorder %s160, %s162
      %p169 = scmp.eq.s32.totalorder %s26, 1
      %p170 = por %p168, %p169
      %p171 = scmp.ne.s32.totalorder %s162, %s163
      %p172 = scmp.eq.s32.totalorder %s26, 0
      %p173 = por %p171, %p172
      %p174 = scmp.ne.s32.totalorder %s162, %s163
      %p175 = scmp.eq.s32.totalorder %s27, 1
      %p176 = por %p174, %p175
      %p178 = scmp.ne.s32.totalorder %s163, %s177
      %p179 = scmp.eq.s32.totalorder %s27, 0
      %p180 = por %p178, %p179
      %s181 = ssub.s32 %s21, %s28
      %p182 = scmp.eq.s32.totalorder %s181, 0
      %s184 = sadd.s32 %s183, 1
      %s185 = scalar_select %p182, %s183, %s184
      %p188 = pneg %p182
      %p189 = scmp.eq.s32.totalorder %s21, 1
      %p190 = por %p188, %p189
      %p191 = scmp.ne.s32.totalorder %s183, %s186
      %p192 = scmp.eq.s32.totalorder %s21, 0
      %p193 = por %p191, %p192
      %p194 = scmp.ne.s32.totalorder %s183, %s186
      %p195 = scmp.eq.s32.totalorder %s26, 1
      %p196 = por %p194, %p195
      %p197 = scmp.ne.s32.totalorder %s186, %s187
      %p198 = scmp.eq.s32.totalorder %s26, 0
      %p199 = por %p197, %p198
      %p200 = scmp.ne.s32.totalorder %s186, %s187
      %p201 = scmp.eq.s32.totalorder %s27, 1
      %p202 = por %p200, %p201
      %p204 = scmp.ne.s32.totalorder %s187, %s203
      %p205 = scmp.eq.s32.totalorder %s27, 0
      %p206 = por %p204, %p205
      %p207 = scmp.le.s32.totalorder 1, %s21
      %p208 = scmp.lt.s32.totalorder %s21, 3
      %p209 = pnand %p207, %p208
      %p210 = pneg %p209
      // Predicated region
      $region9: #{tpu_custom_call.1} parent=5 // pred_check
        _
      $region10: #{tpu_custom_call.1} parent=5 // pred_check_branch
        %212 = sbr.rel (%p209) target = $region12
      $region11: #{tpu_custom_call.1} parent=5 // pred_region
        %s213 = ssub.s32 %s21, 1
        // Predicated region
        $region13: #{tpu_custom_call.1} parent=11 // pred_check
          %p214 = pneg %p68
        $region14: #{tpu_custom_call.1} parent=11 // pred_check_branch
          %216 = sbr.rel (%p214) target = $region16
        $region15: #{tpu_custom_call.1} parent=11 // pred_region
          %s218 = ssub.s32 512, 512
          %219 = vsyncadd [#allocation6], %s218
          %s220 = sshll.u32 [#allocation5], 4
          %s221 = int_to_ptr.vmem [resolvable:$true] %s220
          %226 = dma.hbm_to_vmem [thread:$0]  %s1, 512, %s221, [#allocation6], 128, 128, 8
        $region16: #{tpu_custom_call.1} parent=11 // pred_fallthru
          _
        // Predicated region
        $region17: #{tpu_custom_call.1} parent=11 // pred_check
          %p227 = pneg %p89
        $region18: #{tpu_custom_call.1} parent=11 // pred_check_branch
          %229 = sbr.rel (%p227) target = $region20
        $region19: #{tpu_custom_call.1} parent=11 // pred_region
          _
        $region20: #{tpu_custom_call.1} parent=11 // pred_fallthru
          _
        // Predicated region
        $region21: #{tpu_custom_call.1} parent=11 // pred_check
          %p230 = pneg %p110
        $region22: #{tpu_custom_call.1} parent=11 // pred_check_branch
          %232 = sbr.rel (%p230) target = $region24
        $region23: #{tpu_custom_call.1} parent=11 // pred_region
          %s234 = ssub.s32 4096, 4096
          %235 = vsyncadd [#allocation6], %s234
          %s236 = sshll.u32 [#allocation7], 4
          %s237 = int_to_ptr.vmem [resolvable:$true] %s236
          %242 = dma.hbm_to_vmem [thread:$0]  %s3, 4096, %s237, [#allocation6], 128, 128, 8
        $region24: #{tpu_custom_call.1} parent=11 // pred_fallthru
          _
        // Predicated region
        $region25: #{tpu_custom_call.1} parent=11 // pred_check
          %p243 = pneg %p131
        $region26: #{tpu_custom_call.1} parent=11 // pred_check_branch
          %245 = sbr.rel (%p243) target = $region28
        $region27: #{tpu_custom_call.1} parent=11 // pred_region
          _
        $region28: #{tpu_custom_call.1} parent=11 // pred_fallthru
          _
        // Predicated region
        $region29: #{tpu_custom_call.1} parent=11 // pred_check
          %p246 = pneg %p152
        $region30: #{tpu_custom_call.1} parent=11 // pred_check_branch
          %248 = sbr.rel (%p246) target = $region32
        $region31: #{tpu_custom_call.1} parent=11 // pred_region
          %s250 = ssub.s32 2048, 2048
          %251 = vsyncadd [#allocation9], %s250
          %s252 = sshll.u32 [#allocation8], 4
          %s253 = int_to_ptr.vmem [resolvable:$true] %s252
          %258 = dma.hbm_to_vmem [thread:$0]  %s5, 2048, %s253, [#allocation9], 64, 64, 4
        $region32: #{tpu_custom_call.1} parent=11 // pred_fallthru
          _
        // Predicated region
        $region33: #{tpu_custom_call.1} parent=11 // pred_check
          %p259 = pneg %p173
        $region34: #{tpu_custom_call.1} parent=11 // pred_check_branch
          %261 = sbr.rel (%p259) target = $region36
        $region35: #{tpu_custom_call.1} parent=11 // pred_region
          _
        $region36: #{tpu_custom_call.1} parent=11 // pred_fallthru
          _
      $region12: #{tpu_custom_call.1} parent=5 // pred_fallthru
        _
      %p262 = scmp.lt.s32.totalorder %s21, 2
      // Predicated region
      $region37: #{tpu_custom_call.1} parent=5 // pred_check
        %p263 = pneg %p262
      $region38: #{tpu_custom_call.1} parent=5 // pred_check_branch
        %265 = sbr.rel (%p263) target = $region40
      $region39: #{tpu_custom_call.1} parent=5 // pred_region
        // Predicated region
        $region41: #{tpu_custom_call.1} parent=39 // pred_check
          %p266 = pneg %p41
        $region42: #{tpu_custom_call.1} parent=39 // pred_check_branch
          %268 = sbr.rel (%p266) target = $region44
        $region43: #{tpu_custom_call.1} parent=39 // pred_region
          %s269 = sand.u32 %s31, 1
          %s270 = scalar_lea.sflag [#allocation3], %s269
          %s271 = sand.u32 %s31, 1
          %s272 = smul.addr %s271, 4
          %s273 = scalar_lea.vmem [#allocation2], %s272
          %s275 = ssub.s32 64, 64
          %276 = vsyncadd %s270, %s275
          %s277 = smul.addr %s21, 64
          %s278 = scalar_lea.hbm %s0, %s277
          %s280 = sshll.u32 %s273, 4
          %s281 = int_to_ptr.vmem [resolvable:$true] %s280
          %283 = dma.hbm_to_vmem [thread:$0]  %s278, 64, %s281, %s270
        $region44: #{tpu_custom_call.1} parent=39 // pred_fallthru
          _
      $region40: #{tpu_custom_call.1} parent=5 // pred_fallthru
        _
      %p284 = scmp.le.s32.totalorder 1, %s21
      %p285 = scmp.lt.s32.totalorder %s21, 3
      %p286 = pnand %p284, %p285
      %p287 = pneg %p286
      // Predicated region
      $region45: #{tpu_custom_call.1} parent=5 // pred_check
        _
      $region46: #{tpu_custom_call.1} parent=5 // pred_check_branch
        %289 = sbr.rel (%p286) target = $region48
      $region47: #{tpu_custom_call.1} parent=5 // pred_region
        %s290 = ssub.s32 %s21, 1
        %s291 = sand.u32 %s34, 1
        %s292 = scalar_lea.sflag [#allocation3], %s291
        %s293 = sand.u32 %s34, 1
        %s294 = smul.addr %s293, 4
        %s295 = scalar_lea.vmem [#allocation2], %s294
        // Predicated region
        $region49: #{tpu_custom_call.1} parent=47 // pred_check
          %p296 = pneg %p47
        $region50: #{tpu_custom_call.1} parent=47 // pred_check_branch
          %298 = sbr.rel (%p296) target = $region52
        $region51: #{tpu_custom_call.1} parent=47 // pred_region
          %299 = dma.done %s292, 64
        $region52: #{tpu_custom_call.1} parent=47 // pred_fallthru
          _
        // Predicated region
        $region53: #{tpu_custom_call.1} parent=47 // pred_check
          %p300 = pneg %p68
        $region54: #{tpu_custom_call.1} parent=47 // pred_check_branch
          %302 = sbr.rel (%p300) target = $region56
        $region55: #{tpu_custom_call.1} parent=47 // pred_region
          %303 = dma.done [#allocation6], 512
        $region56: #{tpu_custom_call.1} parent=47 // pred_fallthru
          _
        // Predicated region
        $region57: #{tpu_custom_call.1} parent=47 // pred_check
          %p304 = pneg %p110
        $region58: #{tpu_custom_call.1} parent=47 // pred_check_branch
          %306 = sbr.rel (%p304) target = $region60
        $region59: #{tpu_custom_call.1} parent=47 // pred_region
          %307 = dma.done [#allocation6], 4096
        $region60: #{tpu_custom_call.1} parent=47 // pred_fallthru
          _
        // Predicated region
        $region61: #{tpu_custom_call.1} parent=47 // pred_check
          %p308 = pneg %p152
        $region62: #{tpu_custom_call.1} parent=47 // pred_check_branch
          %310 = sbr.rel (%p308) target = $region64
        $region63: #{tpu_custom_call.1} parent=47 // pred_region
          %311 = dma.done [#allocation9], 2048
        $region64: #{tpu_custom_call.1} parent=47 // pred_fallthru
          _
        %s312 = sand.u32 %s34, 1
        %s313 = scalar_lea.sflag [#allocation3], %s312
        %s314 = sand.u32 %s34, 1
        %s315 = smul.addr %s314, 4
        %s316 = scalar_lea.vmem [#allocation2], %s315
        %p317 = pneg %p47
        %p318 = pneg %p44
        %p319 = pneg %p68
        %p320 = pneg %p65
        %p321 = pneg %p89
        %p322 = pneg %p86
        %p323 = pneg %p110
        %p324 = pneg %p107
        %p325 = pneg %p131
        %p326 = pneg %p128
        %p327 = pneg %p152
        %p328 = pneg %p149
        %p329 = pneg %p173
        %p330 = pneg %p170
        %p331 = pneg %p199
        %p332 = pneg %p196
        %s333 = sand.u32 %s186, 1
        %s334 = scalar_lea.sflag [#allocation4], %s333
        %s335 = sand.u32 %s186, 1
        %s336 = smul.addr %s335, 8
        %s337 = scalar_lea.vmem [#allocation10], %s336
        %v339 = vld [vmem:[%s295] sm:$0xf]
        %v340 = vld [vmem:[#allocation5] sm:$0xff]
        %v341 = vld [vmem:[#allocation5 + $0x8] sm:$0xff]
        %v342 = vld [vmem:[#allocation5 + $0x10] sm:$0xff]
        %v343 = vld [vmem:[#allocation5 + $0x18] sm:$0xff]
        %v344 = vld [vmem:[%s2] sm:$0x3]
        %v346 = vlaneseq
        %v347 = vshrl.u32 %v346, 7
        %v348 = vsub.s32 0, %v347
        %v349 = vrot.slane %v344, %v348
        %v350 = vlaneseq
        %v351 = vshrl.u32 %v350, 7
        %v352 = vsub.s32 1, %v351
        %v353 = vrot.slane %v344, %v352
        %v360 = vunpack.c.l.b16 %v340
        %v361 = vunpack.c.h.b16 %v340
        %v362 = vunpack.c.l.b16 %v341
        %v363 = vunpack.c.h.b16 %v341
        %v364 = vunpack.c.l.b16 %v342
        %v365 = vunpack.c.h.b16 %v342
        %v366 = vunpack.c.l.b16 %v343
        %v367 = vunpack.c.h.b16 %v343
        %v368 = vpack.c.b16 %v362, %v360
        %v369 = vpack.c.b16 %v363, %v361
        %v370 = vpack.c.b16 %v366, %v364
        %v371 = vpack.c.b16 %v367, %v365
        %vm376 = vcmask 261120
        %v378 = vsel %vm376, %v339, 0
        %380 = vmatprep.subr.bf16.mxu0 0
        %381 = vmatpush1.bf16.msra.mxu0 0
        %382 = vmatprep.subr.bf16.mxu0 0
        %383 = vmatpush1.bf16.msra.mxu0 0
        %384 = vmatprep.subr.bf16.mxu0 0
        %385 = vmatpush1.bf16.msra.mxu0 0
        %386 = vmatprep.subr.bf16.mxu0 0
        %387 = vmatpush1.bf16.msra.mxu0 0
        %388 = vmatprep.subr.bf16.mxu0 0
        %389 = vmatpush1.bf16.msra.mxu0 0
        %390 = vmatprep.subr.bf16.mxu0 0
        %391 = vmatpush1.bf16.msra.mxu0 0
        %392 = vmatprep.subr.bf16.mxu0 %v371
        %393 = vmatpush1.bf16.msra.mxu0 %v370
        %394 = vmatprep.subr.bf16.mxu0 %v369
        %395 = vmatpush1.bf16.msra.mxu0 %v368
        %396 = vmatprep.subr.bf16.mxu0 0
        %397 = vmatpush2.bf16.msra.mxu0 0
        %398 = vmatprep.subr.bf16.mxu0 0
        %399 = vmatpush2.bf16.msra.mxu0 0
        %400 = vmatprep.subr.bf16.mxu0 0
        %401 = vmatpush2.bf16.msra.mxu0 0
        %402 = vmatprep.subr.bf16.mxu0 0
        %403 = vmatpush2.bf16.msra.mxu0 0
        %404 = vmatprep.subr.bf16.mxu0 0
        %405 = vmatpush2.bf16.msra.mxu0 0
        %406 = vmatprep.subr.bf16.mxu0 0
        %407 = vmatpush2.bf16.msra.mxu0 0
        %408 = vmatprep.subr.bf16.mxu0 0
        %409 = vmatpush2.bf16.msra.mxu0 0
        %410 = vmatprep.subr.bf16.mxu0 0
        %411 = vmatpush2.bf16.msra.mxu0 0
        %412 = vmatprep.mubr.bf16.mxu0 0
        %413 = vmatmul.mubr.bf16.gmra.mxu0 %v378
        %v414 = vpop.f32.mrf.mxu0
        %v415 = vadd.f32 %v349, %v414
        %v416 = vpop.f32.mrf.mxu0
        %v417 = vadd.f32 %v353, %v416
        %v418 = vpop.f32.mrf.mxu0
        %v419 = vpop.f32.mrf.mxu0
        %420 = vdwg.mxu0
        %vm421 = vcmp.ge.f32.partialorder %v415, 0.0
        %vm422 = vcmp.ge.f32.partialorder %v417, 0.0
        %v423 = vmul.f32 %v415, 0.2
        %v424 = vmul.f32 %v417, 0.2
        %v425 = vsel %vm421, %v415, %v423
        %v426 = vsel %vm422, %v417, %v424
        %v427 = vpack.c.bf16 %v425, %v425
        %v428 = vpack.c.bf16 %v426, %v426
        %v429 = vld [vmem:[#allocation7] sm:$0xff]
        %v430 = vld [vmem:[#allocation7 + $0x8] sm:$0xff]
        %v431 = vld [vmem:[#allocation7 + $0x10] sm:$0xff]
        %v432 = vld [vmem:[#allocation7 + $0x18] sm:$0xff]
        %v433 = vld [vmem:[#allocation7 + $0x20] sm:$0xff]
        %v434 = vld [vmem:[#allocation7 + $0x28] sm:$0xff]
        %v435 = vld [vmem:[#allocation7 + $0x30] sm:$0xff]
        %v436 = vld [vmem:[#allocation7 + $0x38] sm:$0xff]
        %v437 = vld [vmem:[#allocation7 + $0x40] sm:$0xff]
        %v438 = vld [vmem:[#allocation7 + $0x48] sm:$0xff]
        %v439 = vld [vmem:[#allocation7 + $0x50] sm:$0xff]
        %v440 = vld [vmem:[#allocation7 + $0x58] sm:$0xff]
        %v441 = vld [vmem:[#allocation7 + $0x60] sm:$0xff]
        %v442 = vld [vmem:[#allocation7 + $0x68] sm:$0xff]
        %v443 = vld [vmem:[#allocation7 + $0x70] sm:$0xff]
        %v444 = vld [vmem:[#allocation7 + $0x78] sm:$0xff]
        %v445 = vld [vmem:[#allocation7 + $0x80] sm:$0xff]
        %v446 = vld [vmem:[#allocation7 + $0x88] sm:$0xff]
        %v447 = vld [vmem:[#allocation7 + $0x90] sm:$0xff]
        %v448 = vld [vmem:[#allocation7 + $0x98] sm:$0xff]
        %v449 = vld [vmem:[#allocation7 + $0xa0] sm:$0xff]
        %v450 = vld [vmem:[#allocation7 + $0xa8] sm:$0xff]
        %v451 = vld [vmem:[#allocation7 + $0xb0] sm:$0xff]
        %v452 = vld [vmem:[#allocation7 + $0xb8] sm:$0xff]
        %v453 = vld [vmem:[#allocation7 + $0xc0] sm:$0xff]
        %v454 = vld [vmem:[#allocation7 + $0xc8] sm:$0xff]
        %v455 = vld [vmem:[#allocation7 + $0xd0] sm:$0xff]
        %v456 = vld [vmem:[#allocation7 + $0xd8] sm:$0xff]
        %v457 = vld [vmem:[#allocation7 + $0xe0] sm:$0xff]
        %v458 = vld [vmem:[#allocation7 + $0xe8] sm:$0xff]
        %v459 = vld [vmem:[#allocation7 + $0xf0] sm:$0xff]
        %v460 = vld [vmem:[#allocation7 + $0xf8] sm:$0xff]
        %v461 = vld [vmem:[%s4] sm:$0x3]
        %v463 = vlaneseq
        %v464 = vshrl.u32 %v463, 7
        %v465 = vsub.s32 0, %v464
        %v466 = vrot.slane %v461, %v465
        %v467 = vlaneseq
        %v468 = vshrl.u32 %v467, 7
        %v469 = vsub.s32 1, %v468
        %v470 = vrot.slane %v461, %v469
        %v505 = vunpack.c.l.b16 %v429
        %v506 = vunpack.c.h.b16 %v429
        %v507 = vunpack.c.l.b16 %v430
        %v508 = vunpack.c.h.b16 %v430
        %v509 = vunpack.c.l.b16 %v431
        %v510 = vunpack.c.h.b16 %v431
        %v511 = vunpack.c.l.b16 %v432
        %v512 = vunpack.c.h.b16 %v432
        %v513 = vunpack.c.l.b16 %v433
        %v514 = vunpack.c.h.b16 %v433
        %v515 = vunpack.c.l.b16 %v434
        %v516 = vunpack.c.h.b16 %v434
        %v517 = vunpack.c.l.b16 %v435
        %v518 = vunpack.c.h.b16 %v435
        %v519 = vunpack.c.l.b16 %v436
        %v520 = vunpack.c.h.b16 %v436
        %v521 = vunpack.c.l.b16 %v437
        %v522 = vunpack.c.h.b16 %v437
        %v523 = vunpack.c.l.b16 %v438
        %v524 = vunpack.c.h.b16 %v438
        %v525 = vunpack.c.l.b16 %v439
        %v526 = vunpack.c.h.b16 %v439
        %v527 = vunpack.c.l.b16 %v440
        %v528 = vunpack.c.h.b16 %v440
        %v529 = vunpack.c.l.b16 %v441
        %v530 = vunpack.c.h.b16 %v441
        %v531 = vunpack.c.l.b16 %v442
        %v532 = vunpack.c.h.b16 %v442
        %v533 = vunpack.c.l.b16 %v443
        %v534 = vunpack.c.h.b16 %v443
        %v535 = vunpack.c.l.b16 %v444
        %v536 = vunpack.c.h.b16 %v444
        %v537 = vunpack.c.l.b16 %v445
        %v538 = vunpack.c.h.b16 %v445
        %v539 = vunpack.c.l.b16 %v446
        %v540 = vunpack.c.h.b16 %v446
        %v541 = vunpack.c.l.b16 %v447
        %v542 = vunpack.c.h.b16 %v447
        %v543 = vunpack.c.l.b16 %v448
        %v544 = vunpack.c.h.b16 %v448
        %v545 = vunpack.c.l.b16 %v449
        %v546 = vunpack.c.h.b16 %v449
        %v547 = vunpack.c.l.b16 %v450
        %v548 = vunpack.c.h.b16 %v450
        %v549 = vunpack.c.l.b16 %v451
        %v550 = vunpack.c.h.b16 %v451
        %v551 = vunpack.c.l.b16 %v452
        %v552 = vunpack.c.h.b16 %v452
        %v553 = vunpack.c.l.b16 %v453
        %v554 = vunpack.c.h.b16 %v453
        %v555 = vunpack.c.l.b16 %v454
        %v556 = vunpack.c.h.b16 %v454
        %v557 = vunpack.c.l.b16 %v455
        %v558 = vunpack.c.h.b16 %v455
        %v559 = vunpack.c.l.b16 %v456
        %v560 = vunpack.c.h.b16 %v456
        %v561 = vunpack.c.l.b16 %v457
        %v562 = vunpack.c.h.b16 %v457
        %v563 = vunpack.c.l.b16 %v458
        %v564 = vunpack.c.h.b16 %v458
        %v565 = vunpack.c.l.b16 %v459
        %v566 = vunpack.c.h.b16 %v459
        %v567 = vunpack.c.l.b16 %v460
        %v568 = vunpack.c.h.b16 %v460
        %v569 = vpack.c.b16 %v507, %v505
        %v570 = vpack.c.b16 %v508, %v506
        %v571 = vpack.c.b16 %v511, %v509
        %v572 = vpack.c.b16 %v512, %v510
        %v573 = vpack.c.b16 %v515, %v513
        %v574 = vpack.c.b16 %v516, %v514
        %v575 = vpack.c.b16 %v519, %v517
        %v576 = vpack.c.b16 %v520, %v518
        %v577 = vpack.c.b16 %v523, %v521
        %v578 = vpack.c.b16 %v524, %v522
        %v579 = vpack.c.b16 %v527, %v525
        %v580 = vpack.c.b16 %v528, %v526
        %v581 = vpack.c.b16 %v531, %v529
        %v582 = vpack.c.b16 %v532, %v530
        %v583 = vpack.c.b16 %v535, %v533
        %v584 = vpack.c.b16 %v536, %v534
        %v585 = vpack.c.b16 %v539, %v537
        %v586 = vpack.c.b16 %v540, %v538
        %v587 = vpack.c.b16 %v543, %v541
        %v588 = vpack.c.b16 %v544, %v542
        %v589 = vpack.c.b16 %v547, %v545
        %v590 = vpack.c.b16 %v548, %v546
        %v591 = vpack.c.b16 %v551, %v549
        %v592 = vpack.c.b16 %v552, %v550
        %v593 = vpack.c.b16 %v555, %v553
        %v594 = vpack.c.b16 %v556, %v554
        %v595 = vpack.c.b16 %v559, %v557
        %v596 = vpack.c.b16 %v560, %v558
        %v597 = vpack.c.b16 %v563, %v561
        %v598 = vpack.c.b16 %v564, %v562
        %v599 = vpack.c.b16 %v567, %v565
        %v600 = vpack.c.b16 %v568, %v566
        %633 = vmatprep.subr.bf16.mxu0 %v584
        %634 = vmatpush1.bf16.msra.mxu0 %v583
        %635 = vmatprep.subr.bf16.mxu0 %v582
        %636 = vmatpush1.bf16.msra.mxu0 %v581
        %637 = vmatprep.subr.bf16.mxu0 %v580
        %638 = vmatpush1.bf16.msra.mxu0 %v579
        %639 = vmatprep.subr.bf16.mxu0 %v578
        %640 = vmatpush1.bf16.msra.mxu0 %v577
        %641 = vmatprep.subr.bf16.mxu0 %v576
        %642 = vmatpush1.bf16.msra.mxu0 %v575
        %643 = vmatprep.subr.bf16.mxu0 %v574
        %644 = vmatpush1.bf16.msra.mxu0 %v573
        %645 = vmatprep.subr.bf16.mxu0 %v572
        %646 = vmatpush1.bf16.msra.mxu0 %v571
        %647 = vmatprep.subr.bf16.mxu0 %v570
        %648 = vmatpush1.bf16.msra.mxu0 %v569
        %649 = vmatprep.subr.bf16.mxu0 %v600
        %650 = vmatpush2.bf16.msra.mxu0 %v599
        %651 = vmatprep.subr.bf16.mxu0 %v598
        %652 = vmatpush2.bf16.msra.mxu0 %v597
        %653 = vmatprep.subr.bf16.mxu0 %v596
        %654 = vmatpush2.bf16.msra.mxu0 %v595
        %655 = vmatprep.subr.bf16.mxu0 %v594
        %656 = vmatpush2.bf16.msra.mxu0 %v593
        %657 = vmatprep.subr.bf16.mxu0 %v592
        %658 = vmatpush2.bf16.msra.mxu0 %v591
        %659 = vmatprep.subr.bf16.mxu0 %v590
        %660 = vmatpush2.bf16.msra.mxu0 %v589
        %661 = vmatprep.subr.bf16.mxu0 %v588
        %662 = vmatpush2.bf16.msra.mxu0 %v587
        %663 = vmatprep.subr.bf16.mxu0 %v586
        %664 = vmatpush2.bf16.msra.mxu0 %v585
        %665 = vmatprep.mubr.bf16.mxu0 %v428
        %666 = vmatmul.mubr.bf16.gmra.mxu0 %v427
        %v667 = vpop.f32.mrf.mxu0
        %v668 = vadd.f32 %v466, %v667
        %v669 = vpop.f32.mrf.mxu0
        %v670 = vadd.f32 %v470, %v669
        %v671 = vpop.f32.mrf.mxu0
        %v672 = vpop.f32.mrf.mxu0
        %673 = vdwg.mxu0
        %vm674 = vcmp.ge.f32.partialorder %v668, 0.0
        %vm675 = vcmp.ge.f32.partialorder %v670, 0.0
        %v676 = vmul.f32 %v668, 0.2
        %v677 = vmul.f32 %v670, 0.2
        %v678 = vsel %vm674, %v668, %v676
        %v679 = vsel %vm675, %v670, %v677
        %v680 = vpack.c.bf16 %v678, %v678
        %v681 = vpack.c.bf16 %v679, %v679
        %v682 = vld [vmem:[#allocation8] sm:$0xf]
        %v683 = vld [vmem:[#allocation8 + $0x4] sm:$0xf]
        %v684 = vld [vmem:[#allocation8 + $0x8] sm:$0xf]
        %v685 = vld [vmem:[#allocation8 + $0xc] sm:$0xf]
        %v686 = vld [vmem:[#allocation8 + $0x10] sm:$0xf]
        %v687 = vld [vmem:[#allocation8 + $0x14] sm:$0xf]
        %v688 = vld [vmem:[#allocation8 + $0x18] sm:$0xf]
        %v689 = vld [vmem:[#allocation8 + $0x1c] sm:$0xf]
        %v690 = vld [vmem:[#allocation8 + $0x20] sm:$0xf]
        %v691 = vld [vmem:[#allocation8 + $0x24] sm:$0xf]
        %v692 = vld [vmem:[#allocation8 + $0x28] sm:$0xf]
        %v693 = vld [vmem:[#allocation8 + $0x2c] sm:$0xf]
        %v694 = vld [vmem:[#allocation8 + $0x30] sm:$0xf]
        %v695 = vld [vmem:[#allocation8 + $0x34] sm:$0xf]
        %v696 = vld [vmem:[#allocation8 + $0x38] sm:$0xf]
        %v697 = vld [vmem:[#allocation8 + $0x3c] sm:$0xf]
        %v698 = vld [vmem:[#allocation8 + $0x40] sm:$0xf]
        %v699 = vld [vmem:[#allocation8 + $0x44] sm:$0xf]
        %v700 = vld [vmem:[#allocation8 + $0x48] sm:$0xf]
        %v701 = vld [vmem:[#allocation8 + $0x4c] sm:$0xf]
        %v702 = vld [vmem:[#allocation8 + $0x50] sm:$0xf]
        %v703 = vld [vmem:[#allocation8 + $0x54] sm:$0xf]
        %v704 = vld [vmem:[#allocation8 + $0x58] sm:$0xf]
        %v705 = vld [vmem:[#allocation8 + $0x5c] sm:$0xf]
        %v706 = vld [vmem:[#allocation8 + $0x60] sm:$0xf]
        %v707 = vld [vmem:[#allocation8 + $0x64] sm:$0xf]
        %v708 = vld [vmem:[#allocation8 + $0x68] sm:$0xf]
        %v709 = vld [vmem:[#allocation8 + $0x6c] sm:$0xf]
        %v710 = vld [vmem:[#allocation8 + $0x70] sm:$0xf]
        %v711 = vld [vmem:[#allocation8 + $0x74] sm:$0xf]
        %v712 = vld [vmem:[#allocation8 + $0x78] sm:$0xf]
        %v713 = vld [vmem:[#allocation8 + $0x7c] sm:$0xf]
        %v714 = vld [vmem:[%s6] sm:$0x1]
        %v716 = vlaneseq
        %v717 = vshrl.u32 %v716, 7
        %v718 = vsub.s32 0, %v717
        %v719 = vrot.slane %v714, %v718
        %v753 = vunpack.c.l.b16 %v682
        %v754 = vunpack.c.l.b16 %v683
        %v755 = vunpack.c.l.b16 %v684
        %v756 = vunpack.c.l.b16 %v685
        %v757 = vunpack.c.l.b16 %v686
        %v758 = vunpack.c.l.b16 %v687
        %v759 = vunpack.c.l.b16 %v688
        %v760 = vunpack.c.l.b16 %v689
        %v761 = vunpack.c.l.b16 %v690
        %v762 = vunpack.c.l.b16 %v691
        %v763 = vunpack.c.l.b16 %v692
        %v764 = vunpack.c.l.b16 %v693
        %v765 = vunpack.c.l.b16 %v694
        %v766 = vunpack.c.l.b16 %v695
        %v767 = vunpack.c.l.b16 %v696
        %v768 = vunpack.c.l.b16 %v697
        %v769 = vunpack.c.l.b16 %v698
        %v770 = vunpack.c.l.b16 %v699
        %v771 = vunpack.c.l.b16 %v700
        %v772 = vunpack.c.l.b16 %v701
        %v773 = vunpack.c.l.b16 %v702
        %v774 = vunpack.c.l.b16 %v703
        %v775 = vunpack.c.l.b16 %v704
        %v776 = vunpack.c.l.b16 %v705
        %v777 = vunpack.c.l.b16 %v706
        %v778 = vunpack.c.l.b16 %v707
        %v779 = vunpack.c.l.b16 %v708
        %v780 = vunpack.c.l.b16 %v709
        %v781 = vunpack.c.l.b16 %v710
        %v782 = vunpack.c.l.b16 %v711
        %v783 = vunpack.c.l.b16 %v712
        %v784 = vunpack.c.l.b16 %v713
        %v785 = vpack.c.b16 %v754, %v753
        %v786 = vpack.c.b16 %v756, %v755
        %v787 = vpack.c.b16 %v758, %v757
        %v788 = vpack.c.b16 %v760, %v759
        %v789 = vpack.c.b16 %v762, %v761
        %v790 = vpack.c.b16 %v764, %v763
        %v791 = vpack.c.b16 %v766, %v765
        %v792 = vpack.c.b16 %v768, %v767
        %v793 = vpack.c.b16 %v770, %v769
        %v794 = vpack.c.b16 %v772, %v771
        %v795 = vpack.c.b16 %v774, %v773
        %v796 = vpack.c.b16 %v776, %v775
        %v797 = vpack.c.b16 %v778, %v777
        %v798 = vpack.c.b16 %v780, %v779
        %v799 = vpack.c.b16 %v782, %v781
        %v800 = vpack.c.b16 %v784, %v783
        %817 = vmatprep.subr.bf16.mxu0 0
        %818 = vmatpush1.bf16.msra.mxu0 %v792
        %819 = vmatprep.subr.bf16.mxu0 0
        %820 = vmatpush1.bf16.msra.mxu0 %v791
        %821 = vmatprep.subr.bf16.mxu0 0
        %822 = vmatpush1.bf16.msra.mxu0 %v790
        %823 = vmatprep.subr.bf16.mxu0 0
        %824 = vmatpush1.bf16.msra.mxu0 %v789
        %825 = vmatprep.subr.bf16.mxu0 0
        %826 = vmatpush1.bf16.msra.mxu0 %v788
        %827 = vmatprep.subr.bf16.mxu0 0
        %828 = vmatpush1.bf16.msra.mxu0 %v787
        %829 = vmatprep.subr.bf16.mxu0 0
        %830 = vmatpush1.bf16.msra.mxu0 %v786
        %831 = vmatprep.subr.bf16.mxu0 0
        %832 = vmatpush1.bf16.msra.mxu0 %v785
        %833 = vmatprep.subr.bf16.mxu0 0
        %834 = vmatpush2.bf16.msra.mxu0 %v800
        %835 = vmatprep.subr.bf16.mxu0 0
        %836 = vmatpush2.bf16.msra.mxu0 %v799
        %837 = vmatprep.subr.bf16.mxu0 0
        %838 = vmatpush2.bf16.msra.mxu0 %v798
        %839 = vmatprep.subr.bf16.mxu0 0
        %840 = vmatpush2.bf16.msra.mxu0 %v797
        %841 = vmatprep.subr.bf16.mxu0 0
        %842 = vmatpush2.bf16.msra.mxu0 %v796
        %843 = vmatprep.subr.bf16.mxu0 0
        %844 = vmatpush2.bf16.msra.mxu0 %v795
        %845 = vmatprep.subr.bf16.mxu0 0
        %846 = vmatpush2.bf16.msra.mxu0 %v794
        %847 = vmatprep.subr.bf16.mxu0 0
        %848 = vmatpush2.bf16.msra.mxu0 %v793
        %849 = vmatprep.mubr.bf16.mxu0 %v681
        %850 = vmatmul.mubr.bf16.gmra.mxu0 %v680
        %v851 = vpop.f32.mrf.mxu0
        %v852 = vadd.f32 %v719, %v851
        %v853 = vpop.f32.mrf.mxu0
        %v854 = vpop.f32.mrf.mxu0
        %v855 = vpop.f32.mrf.mxu0
        %856 = vdwg.mxu0
        %vm857 = vcmp.ge.f32.partialorder %v852, 0.0
        %v858 = vmul.f32 %v852, 0.2
        %v859 = vsel %vm857, %v852, %v858
        %860 = vst [vmem:[%s337] sm:$0xff] %v859
        %s861 = sand.u32 %s186, 1
        %s862 = scalar_lea.sflag [#allocation4], %s861
        %s863 = sand.u32 %s186, 1
        %s864 = smul.addr %s863, 8
        %s865 = scalar_lea.vmem [#allocation10], %s864
        // Predicated region
        $region65: #{tpu_custom_call.1} parent=47 // pred_check
          %p866 = pneg %p196
        $region66: #{tpu_custom_call.1} parent=47 // pred_check_branch
          %868 = sbr.rel (%p866) target = $region68
        $region67: #{tpu_custom_call.1} parent=47 // pred_region
          %s870 = ssub.s32 128, 128
          %871 = vsyncadd %s862, %s870
          %s872 = smul.addr %s26, 128
          %s873 = scalar_lea.hbm %s7, %s872
          %s875 = sshll.u32 %s865, 4
          %s876 = int_to_ptr.vmem [resolvable:$true] %s875
          %878 = dma.vmem_to_hbm [thread:$0]  %s876, 128, %s873, %s862
        $region68: #{tpu_custom_call.1} parent=47 // pred_fallthru
          _
      $region48: #{tpu_custom_call.1} parent=5 // pred_fallthru
        _
      %p879 = scmp.le.s32.totalorder 2, %s21
      // Predicated region
      $region69: #{tpu_custom_call.1} parent=5 // pred_check
        %p880 = pneg %p879
      $region70: #{tpu_custom_call.1} parent=5 // pred_check_branch
        %882 = sbr.rel (%p880) target = $region72
      $region71: #{tpu_custom_call.1} parent=5 // pred_region
        %s883 = ssub.s32 %s21, 2
        // Predicated region
        $region73: #{tpu_custom_call.1} parent=71 // pred_check
          %p884 = pneg %p202
        $region74: #{tpu_custom_call.1} parent=71 // pred_check_branch
          %886 = sbr.rel (%p884) target = $region76
        $region75: #{tpu_custom_call.1} parent=71 // pred_region
          %s887 = sand.u32 %s187, 1
          %s888 = scalar_lea.sflag [#allocation4], %s887
          %s889 = sand.u32 %s187, 1
          %s890 = smul.addr %s889, 8
          %s891 = scalar_lea.vmem [#allocation10], %s890
          %892 = dma.done %s888, 128
        $region76: #{tpu_custom_call.1} parent=71 // pred_fallthru
          _
      $region72: #{tpu_custom_call.1} parent=5 // pred_fallthru
        _
    $region6: #{tpu_custom_call.1} parent=1 // loop_footer
      %s25 = sadd.s32 1, %s21
    $region7: #{tpu_custom_call.1} parent=1 // loop_footer_branch
      %20 = sbr.rel target = $region3
    $region8: #{tpu_custom_call.1} parent=1 // loop_exit
      _
    %893 = vsyncpa [#allocation3], 1
    %s894 = scalar_lea.sflag [#allocation3], 1
    %895 = vsyncpa %s894, 1
    %896 = vsyncpa [#allocation6], 1
    %897 = vsyncpa [#allocation9], 1
    %898 = vsyncpa [#allocation4], 1
    %s899 = scalar_lea.sflag [#allocation4], 1
    %900 = vsyncpa %s899, 1

</llo_original>
